<compile_context>
chip_gen: v7x
topology: tpu7x:2x2x1
jax: 0.10.0
libtpu: 0.0.40
codegen_flags: <defaults>
</compile_context>

<pallas_src>
import functools

import jax
import jax.numpy as jnp
from jax.experimental import pallas as pl
from jax.experimental.pallas import tpu as pltpu


def _round_up(x, m):
    return ((x + m - 1) // m) * m


def _cdiv(a, b):
    return (a + b - 1) // b


def _e2s_kernel(bq_ref, batch_ref, x_ref, u_ref, w2t_ref, b2_ref, q_ref,
                out_ref, *, n_nodes, tiles_per_core, n_real_tiles):
    c = pl.program_id(0)          # core-split axis ("parallel")
    k = pl.program_id(1)          # node-tile axis ("arbitrary")
    tile = c * tiles_per_core + k

    @pl.when(k == 0)
    def _init():
        out_ref[...] = jnp.zeros_like(out_ref)

    # Skip duplicate steps created by the per-core tile split (their x block
    # index is clamped in the index_map, so the DMA is in-bounds, but the data
    # must not be accumulated twice).
    @pl.when(tile < n_real_tiles)
    def _compute():
        TN, H = x_ref.shape
        B = u_ref.shape[0]

        # Mask rows past the real node count (ragged last tile; also protects
        # against garbage in the partially out-of-bounds DMA region).
        rows = tile * TN + jax.lax.broadcasted_iota(jnp.int32, (TN, 1), 0)
        x = jnp.where(rows < n_nodes, x_ref[...], 0.0).astype(jnp.float32)

        # One-hot session membership (B, TN), built directly in bf16 for the
        # MXU; padded batch ids carry the value B so they match nothing.
        # TODO(synk): for very large num_sessions, slice u/onehot to the tile's
        # contiguous session range (batch is sorted) to bound the B*TN cost.
        seg = jax.lax.broadcasted_iota(jnp.int32, (B, TN), 0)
        onehot = (seg == batch_ref[...]).astype(jnp.bfloat16)

        # u[batch]: broadcast session vectors back to nodes via a transposed
        # contraction over the (tiny) B axis — XLU transpose is otherwise idle.
        u_rep = jax.lax.dot_general(
            onehot, u_ref[...],
            dimension_numbers=(((0,), (0,)), ((), ())),
            preferred_element_type=jnp.float32)                      # (TN, H)

        # g = sigmoid(W1(v_n)[batch] + W2(x) + b2)   (bf16 MXU, f32 accumulate)
        h2 = jnp.dot(x.astype(jnp.bfloat16), w2t_ref[...],
                     preferred_element_type=jnp.float32) + b2_ref[...]
        g = jax.nn.sigmoid(u_rep + h2)                               # f32 VPU/EUP

        # alpha = q . g + bq  (lane-parallel multiply + reduce, f32)
        alpha = jnp.sum(g * q_ref[...], axis=-1, keepdims=True) + bq_ref[0]

        # per-session partial sum of alpha * x  (segment sum as one-hot matmul)
        p = (alpha * x).astype(jnp.bfloat16)
        out_ref[...] += jnp.dot(onehot, p, preferred_element_type=jnp.float32)


@functools.partial(jax.jit, static_argnames=("num_sessions",))
def embedding2score_forward(session_embedding, batch, params, num_sessions):
    """session_embedding: (N, H), batch: (N,) sorted int session ids."""
    N, H = session_embedding.shape
    B = num_sessions
    f32, bf16 = jnp.float32, jnp.bfloat16

    # --- node tiling -------------------------------------------------------
    itemsize = jnp.dtype(session_embedding.dtype).itemsize
    sub = {4: 8, 2: 16, 1: 32}.get(itemsize, 8)        # sublane alignment
    if N >= 256:
        TN = min(1024, _round_up(N, 256))
    else:
        TN = _round_up(N, sub)                          # single exact-ish tile
    n_tiles = _cdiv(N, TN)
    NC = 2 if n_tiles >= 2 else 1                       # both TCs on v7x
    tpc = _cdiv(n_tiles, NC)                            # tiles per core
    total_tiles = NC * tpc
    NP = total_tiles * TN

    # batch ids: tiny int32 pad so every tile's id row is well defined;
    # padded ids == B match no session.
    batch_i = batch.astype(jnp.int32)
    batch_row = jnp.pad(batch_i, (0, NP - N), constant_values=B).reshape(1, NP)

    # --- tiny prologue (plain JAX, O(B*H^2)) --------------------------------
    sections = jnp.bincount(batch_i, length=B)
    last_idx = jnp.cumsum(sections) - 1
    v_n = session_embedding[last_idx].astype(f32)                    # (B, H)
    u = v_n @ params["W1_w"].T.astype(f32) + params["W1_b"].astype(f32)

    w2t = params["W2_w"].T.astype(bf16)                              # (H, H)
    b2 = params["W2_b"].astype(f32).reshape(1, H)
    q_row = params["q_w"].reshape(1, H).astype(f32)
    bq = params["q_b"].astype(f32).reshape(1)

    kernel = functools.partial(_e2s_kernel, n_nodes=N,
                               tiles_per_core=tpc, n_real_tiles=n_tiles)

    def x_tile_idx(c, k):
        # clamp so the core split never produces a fully out-of-bounds block
        return jnp.minimum(c * tpc + k, n_tiles - 1)

    def const(shape):
        # grid-invariant operand: single buffer (no wasted second VMEM copy)
        return pl.BlockSpec(shape, lambda c, k: (0, 0),
                            pipeline_mode=pl.Buffered(buffer_count=1))

    cost = pl.CostEstimate(
        flops=2 * N * H * (H + 2 * B) + 8 * N * H,
        transcendentals=N * H,
        bytes_accessed=(N * H * itemsize + 4 * NP + 2 * H * H
                        + 2 * B * H + 8 * H + 4 + 4 * NC * B * H))

    sg_parts = pl.pallas_call(
        kernel,
        out_shape=jax.ShapeDtypeStruct((NC, B, H), f32),
        grid=(NC, tpc),
        in_specs=[
            pl.BlockSpec(memory_space=pltpu.MemorySpace.SMEM),          # bq
            pl.BlockSpec((1, TN), lambda c, k: (0, c * tpc + k)),       # batch ids
            pl.BlockSpec((TN, H), lambda c, k: (x_tile_idx(c, k), 0)),  # x tile
            const((B, H)),                                              # u (bf16)
            const((H, H)),                                              # W2^T (bf16)
            const((1, H)),                                              # b2 (f32)
            const((1, H)),                                              # q  (f32)
        ],
        out_specs=pl.BlockSpec((None, B, H), lambda c, k: (c, 0, 0)),
        compiler_params=pltpu.CompilerParams(
            dimension_semantics=("parallel", "arbitrary"),
            vmem_limit_bytes=56 * 1024 * 1024),
        cost_estimate=cost,
    )(bq, batch_row, session_embedding, u.astype(bf16), w2t, b2, q_row)

    # --- tiny epilogue (plain JAX): combine core partials + W3 --------------
    s_g = sg_parts.sum(axis=0)                                       # (B, H)
    w3 = params["W3_w"].astype(f32)
    s_h = (v_n @ w3[:, :H].T + s_g @ w3[:, H:].T
           + params["W3_b"].astype(f32))
    return s_h


def init_params(key, hidden_size):
    """Deterministic init matching nn.Linear shapes (uniform +/- 1/sqrt(fan_in))."""
    H = hidden_size
    ks = jax.random.split(key, 8)

    def lin(kw, kb, out_f, in_f):
        bound = 1.0 / (in_f ** 0.5)
        w = jax.random.uniform(kw, (out_f, in_f), jnp.float32, -bound, bound)
        b = jax.random.uniform(kb, (out_f,), jnp.float32, -bound, bound)
        return w, b

    p = {}
    p["W1_w"], p["W1_b"] = lin(ks[0], ks[1], H, H)
    p["W2_w"], p["W2_b"] = lin(ks[2], ks[3], H, H)
    p["q_w"], p["q_b"] = lin(ks[4], ks[5], 1, H)
    p["W3_w"], p["W3_b"] = lin(ks[6], ks[7], H, 2 * H)
    return p


def reference_forward(x, batch, params, B):
    """Pure-JAX f32 reference of the PyTorch forward (for correctness check)."""
    sections = jnp.bincount(batch, length=B)
    last_idx = jnp.cumsum(sections) - 1
    v_n = x[last_idx]                                   # (B, H)
    v_n_rep = v_n[batch]                                # (N, H)
    h = jax.nn.sigmoid(v_n_rep @ params["W1_w"].T + params["W1_b"]
                       + x @ params["W2_w"].T + params["W2_b"])
    alpha = h @ params["q_w"].T + params["q_b"]         # (N, 1)
    s_g = jax.ops.segment_sum(alpha * x, batch, num_segments=B)
    s_h = jnp.concatenate([v_n, s_g], axis=1) @ params["W3_w"].T + params["W3_b"]
    return s_h


if __name__ == "__main__":
    key = jax.random.PRNGKey(0)
    k_emb, k_items, k_par = jax.random.split(key, 3)

    hidden = 32
    num_sessions = 2
    # 8 nodes total: session 0 has 3 nodes, session 1 has 5 nodes (sorted batch).
    batch = jnp.array([0, 0, 0, 1, 1, 1, 1, 1], dtype=jnp.int32)
    n_nodes = batch.shape[0]

    session_embedding = jax.random.normal(k_emb, (n_nodes, hidden), jnp.float32)
    # all_item_embedding is an argument of the PyTorch forward but never used in
    # computing s_h; built only for shape fidelity.
    all_item_embedding = jax.random.normal(k_items, (10, hidden), jnp.float32)

    params = init_params(k_par, hidden)

    out = embedding2score_forward(session_embedding, batch, params, num_sessions)
    out = jax.block_until_ready(out)

    ref = reference_forward(session_embedding, batch, params, num_sessions)
    assert out.shape == (num_sessions, hidden)
    # bf16 MXU operands with f32 accumulation -> slightly looser tolerance.
    assert jnp.allclose(out, ref, atol=3e-2, rtol=3e-2), "mismatch vs reference"

    print("KERNEL_OK")
</pallas_src>

<mosaic_0001>
module attributes {stable_mosaic.version = 11 : i64} {
  func.func @_e2s_kernel(%arg0: i32, %arg1: i32, %arg2: memref<1xf32, #tpu.memory_space<smem>>, %arg3: memref<1x8xi32, #tpu.memory_space<vmem>>, %arg4: memref<8x32xf32, #tpu.memory_space<vmem>>, %arg5: memref<2x32xbf16, #tpu.memory_space<vmem>>, %arg6: memref<32x32xbf16, #tpu.memory_space<vmem>>, %arg7: memref<1x32xf32, #tpu.memory_space<vmem>>, %arg8: memref<1x32xf32, #tpu.memory_space<vmem>>, %arg9: memref<1x2x32xf32, #tpu.memory_space<vmem>>) attributes {dimension_semantics = [#tpu.dimension_semantics<parallel>, #tpu.dimension_semantics<arbitrary>], iteration_bounds = array<i64: 1, 1>, scalar_prefetch = 0 : i64, scratch_operands = 0 : i64, tpu.core_type = #tpu.core_type<tc>, window_params = [{transform_indices = @transform_0, window_bounds = array<i64: 1>}, {transform_indices = @transform_1, window_bounds = array<i64: 1, 8>}, {transform_indices = @transform_2, window_bounds = array<i64: 8, 32>}, {pipeline_mode = #tpu.pipeline_mode<synchronous>, transform_indices = @transform_3, window_bounds = array<i64: 2, 32>}, {pipeline_mode = #tpu.pipeline_mode<synchronous>, transform_indices = @transform_4, window_bounds = array<i64: 32, 32>}, {pipeline_mode = #tpu.pipeline_mode<synchronous>, transform_indices = @transform_5, window_bounds = array<i64: 1, 32>}, {pipeline_mode = #tpu.pipeline_mode<synchronous>, transform_indices = @transform_6, window_bounds = array<i64: 1, 32>}, {transform_indices = @transform_7, window_bounds = array<i64: 1, 2, 32>}]} {
    %c1_i32 = arith.constant 1 : i32
    %0 = arith.muli %arg0, %c1_i32 : i32
    %1 = arith.addi %0, %arg1 : i32
    %c0_i32 = arith.constant 0 : i32
    %2 = arith.cmpi eq, %arg1, %c0_i32 : i32
    %3 = arith.extui %2 : i1 to i32
    %c0_i32_0 = arith.constant 0 : i32
    %4 = arith.cmpi ne, %3, %c0_i32_0 : i32
    scf.if %4 {
      %cst = arith.constant 0.000000e+00 : f32
      %8 = vector.broadcast %cst : f32 to vector<2x32xf32>
      %c0 = arith.constant 0 : index
      %c0_3 = arith.constant 0 : index
      %c0_4 = arith.constant 0 : index
      %9 = vector.load %arg9[%c0, %c0_3, %c0_4] : memref<1x2x32xf32, #tpu.memory_space<vmem>>, vector<1x2x32xf32>
      %10 = vector.shape_cast %9 : vector<1x2x32xf32> to vector<2x32xf32>
      %11 = vector.shape_cast %8 : vector<2x32xf32> to vector<1x2x32xf32>
      tpu.vector_store %arg9[%c0, %c0_3, %c0_4], %11 {strides = array<i32>} : memref<1x2x32xf32, #tpu.memory_space<vmem>>, vector<1x2x32xf32>,
    } else {
    }
    %c1_i32_1 = arith.constant 1 : i32
    %5 = arith.cmpi slt, %1, %c1_i32_1 : i32
    %6 = arith.extui %5 : i1 to i32
    %c0_i32_2 = arith.constant 0 : i32
    %7 = arith.cmpi ne, %6, %c0_i32_2 : i32
    scf.if %7 {
      %c8_i32 = arith.constant 8 : i32
      %8 = arith.muli %1, %c8_i32 : i32
      %9 = tpu.iota {dimensions = array<i32: 0>} : vector<8x1xi32>
      %10 = vector.broadcast %8 : i32 to vector<8x1xi32>
      %11 = arith.addi %10, %9 : vector<8x1xi32>
      %c8_i32_3 = arith.constant 8 : i32
      %12 = vector.broadcast %c8_i32_3 : i32 to vector<8x1xi32>
      %13 = arith.cmpi slt, %11, %12 : vector<8x1xi32>
      %c0 = arith.constant 0 : index
      %c0_4 = arith.constant 0 : index
      %14 = vector.load %arg4[%c0, %c0_4] : memref<8x32xf32, #tpu.memory_space<vmem>>, vector<8x32xf32>
      %cst = arith.constant 0.000000e+00 : f32
      %15 = vector.shape_cast %13 : vector<8x1xi1> to vector<8x1xi1>
      %16 = vector.broadcast %15 : vector<8x1xi1> to vector<8x32xi1>
      %17 = vector.broadcast %cst : f32 to vector<8x32xf32>
      %18 = arith.select %16, %14, %17 : vector<8x32xi1>, vector<8x32xf32>
      %19 = tpu.iota {dimensions = array<i32: 0>} : vector<2x8xi32>
      %c0_5 = arith.constant 0 : index
      %c0_6 = arith.constant 0 : index
      %20 = vector.load %arg3[%c0_5, %c0_6] : memref<1x8xi32, #tpu.memory_space<vmem>>, vector<1x8xi32>
      %21 = vector.broadcast %20 : vector<1x8xi32> to vector<2x8xi32>
      %22 = arith.cmpi eq, %19, %21 : vector<2x8xi32>
      %23 = arith.extui %22 : vector<2x8xi1> to vector<2x8xi32>
      %24 = arith.sitofp %23 : vector<2x8xi32> to vector<2x8xf32>
      %25 = arith.truncf %24 : vector<2x8xf32> to vector<2x8xbf16>
      %c0_7 = arith.constant 0 : index
      %c0_8 = arith.constant 0 : index
      %26 = vector.load %arg5[%c0_7, %c0_8] : memref<2x32xbf16, #tpu.memory_space<vmem>>, vector<2x32xbf16>
      %cst_9 = arith.constant dense<0.000000e+00> : vector<8x32xf32>
      %27 = tpu.matmul %25, %26, %cst_9 {dimension_numbers = #tpu.dot_dimension_numbers<[0], [0], [1], [1], [0, 1, 1, 1], [], []>} : vector<2x8xbf16>, vector<2x32xbf16>, vector<8x32xf32> -> vector<8x32xf32>
      %28 = arith.truncf %18 : vector<8x32xf32> to vector<8x32xbf16>
      %c0_10 = arith.constant 0 : index
      %c0_11 = arith.constant 0 : index
      %29 = vector.load %arg6[%c0_10, %c0_11] : memref<32x32xbf16, #tpu.memory_space<vmem>>, vector<32x32xbf16>
      %cst_12 = arith.constant dense<0.000000e+00> : vector<8x32xf32>
      %30 = tpu.matmul %28, %29, %cst_12 {dimension_numbers = #tpu.dot_dimension_numbers<[1], [0], [0], [1], [0, 0, 1, 1], [], []>} : vector<8x32xbf16>, vector<32x32xbf16>, vector<8x32xf32> -> vector<8x32xf32>
      %c0_13 = arith.constant 0 : index
      %c0_14 = arith.constant 0 : index
      %31 = vector.load %arg7[%c0_13, %c0_14] : memref<1x32xf32, #tpu.memory_space<vmem>>, vector<1x32xf32>
      %32 = vector.broadcast %31 : vector<1x32xf32> to vector<8x32xf32>
      %33 = arith.addf %30, %32 : vector<8x32xf32>
      %34 = arith.addf %27, %33 : vector<8x32xf32>
      %35 = arith.negf %34 : vector<8x32xf32>
      %36 = math.exp %35 : vector<8x32xf32>
      %cst_15 = arith.constant 1.000000e+00 : f32
      %37 = vector.broadcast %cst_15 : f32 to vector<8x32xf32>
      %38 = arith.addf %37, %36 : vector<8x32xf32>
      %39 = arith.divf %37, %38 : vector<8x32xf32>
      %c0_16 = arith.constant 0 : index
      %c0_17 = arith.constant 0 : index
      %40 = vector.load %arg8[%c0_16, %c0_17] : memref<1x32xf32, #tpu.memory_space<vmem>>, vector<1x32xf32>
      %41 = vector.broadcast %40 : vector<1x32xf32> to vector<8x32xf32>
      %42 = arith.mulf %39, %41 : vector<8x32xf32>
      %cst_18 = arith.constant dense<0.000000e+00> : vector<8xf32>
      %43 = vector.multi_reduction <add>, %42, %cst_18 [1] : vector<8x32xf32> to vector<8xf32>
      %44 = vector.shape_cast %43 : vector<8xf32> to vector<8x1xf32>
      %c0_19 = arith.constant 0 : index
      %45 = memref.load %arg2[%c0_19] : memref<1xf32, #tpu.memory_space<smem>>
      %46 = vector.broadcast %45 : f32 to vector<8x1xf32>
      %47 = arith.addf %44, %46 : vector<8x1xf32>
      %48 = vector.broadcast %47 : vector<8x1xf32> to vector<8x32xf32>
      %49 = arith.mulf %48, %18 : vector<8x32xf32>
      %50 = arith.truncf %49 : vector<8x32xf32> to vector<8x32xbf16>
      %c0_20 = arith.constant 0 : index
      %c0_21 = arith.constant 0 : index
      %c0_22 = arith.constant 0 : index
      %51 = vector.load %arg9[%c0_20, %c0_21, %c0_22] : memref<1x2x32xf32, #tpu.memory_space<vmem>>, vector<1x2x32xf32>
      %52 = vector.shape_cast %51 : vector<1x2x32xf32> to vector<2x32xf32>
      %cst_23 = arith.constant dense<0.000000e+00> : vector<2x32xf32>
      %53 = tpu.matmul %25, %50, %cst_23 {dimension_numbers = #tpu.dot_dimension_numbers<[1], [0], [0], [1], [0, 0, 1, 1], [], []>} : vector<2x8xbf16>, vector<8x32xbf16>, vector<2x32xf32> -> vector<2x32xf32>
      %54 = arith.addf %52, %53 : vector<2x32xf32>
      %c0_24 = arith.constant 0 : index
      %c0_25 = arith.constant 0 : index
      %c0_26 = arith.constant 0 : index
      %55 = vector.load %arg9[%c0_24, %c0_25, %c0_26] : memref<1x2x32xf32, #tpu.memory_space<vmem>>, vector<1x2x32xf32>
      %56 = vector.shape_cast %55 : vector<1x2x32xf32> to vector<2x32xf32>
      %57 = vector.shape_cast %54 : vector<2x32xf32> to vector<1x2x32xf32>
      tpu.vector_store %arg9[%c0_24, %c0_25, %c0_26], %57 {strides = array<i32>} : memref<1x2x32xf32, #tpu.memory_space<vmem>>, vector<1x2x32xf32>,
    } else {
    }
    return
  }
  func.func @transform_0(%arg0: i32, %arg1: i32) -> i32 {
    %c0_i32 = arith.constant 0 : i32
    %c0_i32_0 = arith.constant 0 : i32
    return %c0_i32 : i32
  }
  func.func @transform_1(%arg0: i32, %arg1: i32) -> (i32, i32) {
    %c1_i32 = arith.constant 1 : i32
    %0 = arith.muli %arg0, %c1_i32 : i32
    %1 = arith.addi %0, %arg1 : i32
    %c0_i32 = arith.constant 0 : i32
    %c0_i32_0 = arith.constant 0 : i32
    return %c0_i32, %1 : i32, i32
  }
  func.func @transform_2(%arg0: i32, %arg1: i32) -> (i32, i32) {
    %c1_i32 = arith.constant 1 : i32
    %0 = arith.muli %arg0, %c1_i32 : i32
    %1 = arith.addi %0, %arg1 : i32
    %c0_i32 = arith.constant 0 : i32
    %2 = arith.minsi %1, %c0_i32 : i32
    %c0_i32_0 = arith.constant 0 : i32
    %c0_i32_1 = arith.constant 0 : i32
    return %2, %c0_i32_0 : i32, i32
  }
  func.func @transform_3(%arg0: i32, %arg1: i32) -> (i32, i32) {
    %c0_i32 = arith.constant 0 : i32
    %c0_i32_0 = arith.constant 0 : i32
    %c0_i32_1 = arith.constant 0 : i32
    return %c0_i32, %c0_i32_0 : i32, i32
  }
  func.func @transform_4(%arg0: i32, %arg1: i32) -> (i32, i32) {
    %c0_i32 = arith.constant 0 : i32
    %c0_i32_0 = arith.constant 0 : i32
    %c0_i32_1 = arith.constant 0 : i32
    return %c0_i32, %c0_i32_0 : i32, i32
  }
  func.func @transform_5(%arg0: i32, %arg1: i32) -> (i32, i32) {
    %c0_i32 = arith.constant 0 : i32
    %c0_i32_0 = arith.constant 0 : i32
    %c0_i32_1 = arith.constant 0 : i32
    return %c0_i32, %c0_i32_0 : i32, i32
  }
  func.func @transform_6(%arg0: i32, %arg1: i32) -> (i32, i32) {
    %c0_i32 = arith.constant 0 : i32
    %c0_i32_0 = arith.constant 0 : i32
    %c0_i32_1 = arith.constant 0 : i32
    return %c0_i32, %c0_i32_0 : i32, i32
  }
  func.func @transform_7(%arg0: i32, %arg1: i32) -> (i32, i32, i32) {
    %c0_i32 = arith.constant 0 : i32
    %c0_i32_0 = arith.constant 0 : i32
    %c0_i32_1 = arith.constant 0 : i32
    return %arg0, %c0_i32, %c0_i32_0 : i32, i32, i32
  }
}

</mosaic_0001>

<llo_original>
// kernel: embedding2score_forward.1
$region0: #{embedding2score_forward.1}
  #allocation0 [shape = 'u32[]', space=smem, size = 0x4, offset = 0x4, fixed_abs, tag = 'smem constant byte address 0x4 - core index']
  #allocation1 [shape = 'u32[144,128]{1,0:T(1,128)}', space=vmem, size = 0x12000, scoped, tag = 'internal scratch']
  #allocation2 [shape = 'f32[1]{0:T(128)S(6)}', space=smem, size = 0x200, scoped, tag = 'scoped memory for embedding2score_forward.1']
  %s0 = inlined_call_operand.<no memory space> [shape: f32[1], index: 0, kind: input, shape index: {}]
  %s1 = inlined_call_operand.vmem [shape: s32[1,8], index: 1, kind: input, shape index: {}]
  %s2 = inlined_call_operand.vmem [shape: f32[8,32], index: 2, kind: input, shape index: {}]
  %s3 = inlined_call_operand.vmem [shape: bf16[2,32], index: 3, kind: input, shape index: {}]
  %s4 = inlined_call_operand.vmem [shape: bf16[32,32], index: 4, kind: input, shape index: {}]
  %s5 = inlined_call_operand.vmem [shape: f32[1,32], index: 5, kind: input, shape index: {}]
  %s6 = inlined_call_operand.vmem [shape: f32[1,32], index: 6, kind: input, shape index: {}]
  %s7 = inlined_call_operand.vmem [shape: f32[1,2,32], index: 7, kind: output, shape index: {}]
  %s8 = sld [smem:[#allocation0]]
  $region46: #{embedding2score_forward.1} parent=0
    _
  %s10 = ssub.s32 1, %s8
  %s11 = scalar_select 0, %s10, %s8
  %12 = sst [smem:[#allocation2]] %s0
  // Predicated region
  $region2: #{embedding2score_forward.1} parent=0 // pred_check
    _
  $region3: #{embedding2score_forward.1} parent=0 // pred_check_branch
    %14 = sbr.rel (0) target = $region5
  $region4: #{embedding2score_forward.1} parent=0 // pred_region
    _
  $region5: #{embedding2score_forward.1} parent=0 // pred_fallthru
    _
  // Predicated region
  $region6: #{embedding2score_forward.1} parent=0 // pred_check
    _
  $region7: #{embedding2score_forward.1} parent=0 // pred_check_branch
    %16 = sbr.rel (0) target = $region9
  $region8: #{embedding2score_forward.1} parent=0 // pred_region
    %s17 = sadd.s32 0, 0
    %p18 = scmp.lt.s32.totalorder %s17, 0
    %s19 = scalar_select %p18, %s17, 0
    %s20 = scalar_lea.vmem %s1, %s19
    %s21 = sadd.s32 0, 0
  $region9: #{embedding2score_forward.1} parent=0 // pred_fallthru
    _
  // Predicated region
  $region10: #{embedding2score_forward.1} parent=0 // pred_check
    _
  $region11: #{embedding2score_forward.1} parent=0 // pred_check_branch
    %23 = sbr.rel (0) target = $region13
  $region12: #{embedding2score_forward.1} parent=0 // pred_region
    %s24 = sadd.s32 0, 0
    %p25 = scmp.lt.s32.totalorder %s24, 0
    %s26 = scalar_select %p25, %s24, 0
    %p27 = scmp.lt.s32.totalorder %s26, 0
    %s28 = scalar_select %p27, %s26, 0
    %s29 = smul.addr %s28, 8
    %s30 = scalar_lea.vmem %s2, %s29
    %s31 = sadd.s32 0, 0
    %p32 = scmp.lt.s32.totalorder %s31, 0
    %s33 = scalar_select %p32, %s31, 0
  $region13: #{embedding2score_forward.1} parent=0 // pred_fallthru
    _
  // Predicated region
  $region14: #{embedding2score_forward.1} parent=0 // pred_check
    _
  $region15: #{embedding2score_forward.1} parent=0 // pred_check_branch
    %35 = sbr.rel (0) target = $region17
  $region16: #{embedding2score_forward.1} parent=0 // pred_region
    _
  $region17: #{embedding2score_forward.1} parent=0 // pred_fallthru
    _
  // Predicated region
  $region18: #{embedding2score_forward.1} parent=0 // pred_check
    _
  $region19: #{embedding2score_forward.1} parent=0 // pred_check_branch
    %37 = sbr.rel (0) target = $region21
  $region20: #{embedding2score_forward.1} parent=0 // pred_region
    _
  $region21: #{embedding2score_forward.1} parent=0 // pred_fallthru
    _
  // Predicated region
  $region22: #{embedding2score_forward.1} parent=0 // pred_check
    _
  $region23: #{embedding2score_forward.1} parent=0 // pred_check_branch
    %39 = sbr.rel (0) target = $region25
  $region24: #{embedding2score_forward.1} parent=0 // pred_region
    _
  $region25: #{embedding2score_forward.1} parent=0 // pred_fallthru
    _
  // Predicated region
  $region26: #{embedding2score_forward.1} parent=0 // pred_check
    _
  $region27: #{embedding2score_forward.1} parent=0 // pred_check_branch
    %41 = sbr.rel (0) target = $region29
  $region28: #{embedding2score_forward.1} parent=0 // pred_region
    _
  $region29: #{embedding2score_forward.1} parent=0 // pred_fallthru
    _
  %s42 = sadd.s32 0, 0
  %p43 = scmp.lt.s32.totalorder %s42, 0
  %s44 = scalar_select %p43, %s42, 0
  %s45 = scalar_lea.vmem %s1, %s44
  %s46 = sadd.s32 0, 0
  %p47 = scmp.lt.s32.totalorder %s46, 0
  %s48 = scalar_select %p47, %s46, 0
  %p49 = scmp.lt.s32.totalorder %s48, 0
  %s50 = scalar_select %p49, %s48, 0
  %s51 = smul.addr %s50, 8
  %s52 = scalar_lea.vmem %s2, %s51
  %s53 = sadd.s32 0, 0
  %p54 = scmp.lt.s32.totalorder %s53, 0
  %s55 = scalar_select %p54, %s53, 0
  %s56 = scalar_lea.vmem %s1, %s55
  %s57 = sadd.s32 0, 0
  %s58 = sadd.s32 0, 0
  %p59 = scmp.lt.s32.totalorder %s58, 0
  %s60 = scalar_select %p59, %s58, 0
  %p61 = scmp.lt.s32.totalorder %s60, 0
  %s62 = scalar_select %p61, %s60, 0
  %s63 = smul.addr %s62, 8
  %s64 = scalar_lea.vmem %s2, %s63
  %s65 = sadd.s32 0, 0
  %p66 = scmp.lt.s32.totalorder %s65, 0
  %s67 = scalar_select %p66, %s65, 0
  %s69 = sadd.s32 0, 0
  %p70 = scmp.eq.s32.totalorder 0, 0
  // Predicated region
  $region30: #{embedding2score_forward.1} parent=0 // pred_check
    %p71 = pneg %p70
  $region31: #{embedding2score_forward.1} parent=0 // pred_check_branch
    %73 = sbr.rel (%p71) target = $region33
  $region32: #{embedding2score_forward.1} parent=0 // pred_region
    %vm74 = vcmask 254976
    %75 = vst.msk [vmem:[%s7] sm:$0x3] %vm74, 0.0
  $region33: #{embedding2score_forward.1} parent=0 // pred_fallthru
    _
  %p76 = scmp.lt.s32.totalorder %s69, 1
  // Predicated region
  $region34: #{embedding2score_forward.1} parent=0 // pred_check
    %p77 = pneg %p76
  $region35: #{embedding2score_forward.1} parent=0 // pred_check_branch
    %79 = sbr.rel (%p77) target = $region37
  $region36: #{embedding2score_forward.1} parent=0 // pred_region
    %s80 = smul.u32 %s69, 8
    %v81 = vlaneseq
    %v82 = vshrl.u32 %v81, 7
    %v83 = vstv %s80
    %v84 = vadd.s32 %v83, %v82
    %vm85 = vcmp.lt.s32.totalorder %v84, 8
    %v86 = vld [vmem:[%s64] sm:$0xff]
    %v87 = vsel %vm85, 1, 0
    %vm88 = vcmp.eq.s32.totalorder %v87, 1
    %v89 = vsel %vm88, %v86, 0.0
    %v90 = vld [vmem:[%s56] sm:$0x1]
    %v91 = vlaneseq
    %v92 = vshrl.u32 %v91, 7
    %v93 = vsub.s32 0, %v92
    %v94 = vrot.slane %v90, %v93
    %vm95 = vcmp.eq.s32.totalorder %v82, %v94
    %v96 = vsel %vm95, 1, 0
    %v97 = vcvt.s32.f32 %v96
    %v98 = vpack.c.bf16 %v97, %v97
    %v99 = vld [vmem:[%s3] sm:$0x1]
    %v100 = vpack.c.bf16 %v89, %v89
    %v101 = vld [vmem:[%s4] sm:$0xf]
    %v102 = vld [vmem:[%s4 + $0x4] sm:$0xf]
    %v103 = vld [vmem:[%s4 + $0x8] sm:$0xf]
    %v104 = vld [vmem:[%s4 + $0xc] sm:$0xf]
    %v105 = vld [vmem:[%s5] sm:$0x1]
    %v107 = vlaneseq
    %v108 = vshrl.u32 %v107, 7
    %v109 = vsub.s32 0, %v108
    %v110 = vrot.slane %v105, %v109
    %v116 = vunpack.c.l.b16 %v101
    %v117 = vunpack.c.l.b16 %v102
    %v118 = vunpack.c.l.b16 %v103
    %v119 = vunpack.c.l.b16 %v104
    %v120 = vpack.c.b16 %v117, %v116
    %v121 = vpack.c.b16 %v119, %v118
    %vm124 = vcmask 261120
    %v126 = vsel %vm124, %v100, 0
    %128 = vmatprep.subr.bf16.mxu0 0
    %129 = vmatpush1.bf16.msra.mxu0 %v120
    %130 = vmatprep.subr.bf16.mxu0 0
    %131 = vmatpush1.bf16.msra.mxu0 %v121
    %132 = vmatprep.subr.bf16.mxu0 0
    %133 = vmatpush1.bf16.msra.mxu0 0
    %134 = vmatprep.subr.bf16.mxu0 0
    %135 = vmatpush1.bf16.msra.mxu0 0
    %136 = vmatprep.subr.bf16.mxu0 0
    %137 = vmatpush1.bf16.msra.mxu0 0
    %138 = vmatprep.subr.bf16.mxu0 0
    %139 = vmatpush1.bf16.msra.mxu0 0
    %140 = vmatprep.subr.bf16.mxu0 0
    %141 = vmatpush1.bf16.msra.mxu0 0
    %142 = vmatprep.subr.bf16.mxu0 0
    %143 = vmatpush1.bf16.msra.mxu0 0
    %144 = vmatprep.subr.bf16.mxu0 0
    %145 = vmatpush1.bf16.msra.mxu0 0
    %146 = vmatprep.subr.bf16.mxu0 0
    %147 = vmatpush1.bf16.msra.mxu0 0
    %148 = vmatprep.subr.bf16.mxu0 0
    %149 = vmatpush1.bf16.msra.mxu0 0
    %150 = vmatprep.subr.bf16.mxu0 0
    %151 = vmatpush1.bf16.msra.mxu0 0
    %152 = vmatprep.subr.bf16.mxu0 0
    %153 = vmatpush1.bf16.msra.mxu0 0
    %154 = vmatprep.subr.bf16.mxu0 0
    %155 = vmatpush1.bf16.msra.mxu0 0
    %156 = vmatprep.subr.bf16.mxu0 0
    %157 = vmatpush1.bf16.msra.mxu0 0
    %158 = vmatprep.subr.bf16.mxu0 0
    %159 = vmatpush1.bf16.msra.mxu0 0
    %160 = vmatprep.mubr.bf16.mxu0 0
    %161 = vmatmul.mubr.bf16.gmra.mrb[0].mxu0 %v126
    %v162 = vpop.f32.mrb[0].mxu0
    %v163 = vadd.f32 %v110, %v162
    %v164 = vpop.f32.mrb[0].mxu0
    %v165 = vpop.f32.mrb[0].mxu0
    %v166 = vpop.f32.mrb[0].mxu0
    %167 = vdwg.mxu0
    %168 = vxpose.xlu0.c.b16.start [1/8] %v98, 128
    %169 = vxpose.xlu0.c.b16.cont [2/8] 0, 128
    %170 = vxpose.xlu0.c.b16.cont [3/8] 0, 128
    %171 = vxpose.xlu0.c.b16.cont [4/8] 0, 128
    %172 = vxpose.xlu0.c.b16.cont [5/8] 0, 128
    %173 = vxpose.xlu0.c.b16.cont [6/8] 0, 128
    %174 = vxpose.xlu0.c.b16.cont [7/8] 0, 128
    %175 = vxpose.xlu0.c.b16.end [8/8] 0, 128
    %v176 = vpop.trf.xlu0
    %v177 = vpop.trf.xlu0
    %v178 = vpop.trf.xlu0
    %v179 = vpop.trf.xlu0
    %v180 = vpop.trf.xlu0
    %v181 = vpop.trf.xlu0
    %v182 = vpop.trf.xlu0
    %v183 = vpop.trf.xlu0
    %vm184 = vcmask 15360
    %v186 = vsel %vm184, %v176, 0
    %vm188 = vcmask 1040384
    %v190 = vsel %vm188, %v99, 0
    %192 = vmatprep.subr.bf16.mxu0 0
    %193 = vmatpush1.bf16.msra.mxu0 %v190
    %194 = vmatprep.subr.bf16.mxu0 0
    %195 = vmatpush1.bf16.msra.mxu0 0
    %196 = vmatprep.subr.bf16.mxu0 0
    %197 = vmatpush1.bf16.msra.mxu0 0
    %198 = vmatprep.subr.bf16.mxu0 0
    %199 = vmatpush1.bf16.msra.mxu0 0
    %200 = vmatprep.subr.bf16.mxu0 0
    %201 = vmatpush1.bf16.msra.mxu0 0
    %202 = vmatprep.subr.bf16.mxu0 0
    %203 = vmatpush1.bf16.msra.mxu0 0
    %204 = vmatprep.subr.bf16.mxu0 0
    %205 = vmatpush1.bf16.msra.mxu0 0
    %206 = vmatprep.subr.bf16.mxu0 0
    %207 = vmatpush1.bf16.msra.mxu0 0
    %208 = vmatprep.subr.bf16.mxu0 0
    %209 = vmatpush1.bf16.msra.mxu0 0
    %210 = vmatprep.subr.bf16.mxu0 0
    %211 = vmatpush1.bf16.msra.mxu0 0
    %212 = vmatprep.subr.bf16.mxu0 0
    %213 = vmatpush1.bf16.msra.mxu0 0
    %214 = vmatprep.subr.bf16.mxu0 0
    %215 = vmatpush1.bf16.msra.mxu0 0
    %216 = vmatprep.subr.bf16.mxu0 0
    %217 = vmatpush1.bf16.msra.mxu0 0
    %218 = vmatprep.subr.bf16.mxu0 0
    %219 = vmatpush1.bf16.msra.mxu0 0
    %220 = vmatprep.subr.bf16.mxu0 0
    %221 = vmatpush1.bf16.msra.mxu0 0
    %222 = vmatprep.subr.bf16.mxu0 0
    %223 = vmatpush1.bf16.msra.mxu0 0
    %224 = vmatprep.mubr.bf16.mxu0 0
    %225 = vmatmul.mubr.bf16.gmra.mrb[0].mxu0 %v186
    %v226 = vpop.f32.mrb[0].mxu0
    %v227 = vadd.f32 %v163, %v226
    %v228 = vpop.f32.mrb[0].mxu0
    %v229 = vpop.f32.mrb[0].mxu0
    %v230 = vpop.f32.mrb[0].mxu0
    %231 = vdwg.mxu0
    %v232 = vxor.u32 %v227, 2147483648
    %v233 = vmul.f32 %v232, 1.442695
    %v234 = vpow.pop %v233
    %v235 = vadd.f32 %v234, 1.0
    %v236 = vrcp.pop %v235
    %v237 = vmul.f32 1.0, %v236
    %v238 = vld [vmem:[%s6] sm:$0x1]
    %v240 = vlaneseq
    %v241 = vshrl.u32 %v240, 7
    %v242 = vsub.s32 0, %v241
    %v243 = vrot.slane %v238, %v242
    %v245 = vmul.f32 %v237, %v243
    %v246 = vsel %vm124, %v245, 0.0
    %247 = vadd.xlane.f32.xlu0 %v246
    %v248 = vpop.xlane.xlu0 %247
    %s249 = sld [smem:[#allocation2]]
    %v250 = vstv %s249
    %v251 = vadd.f32 %v248, %v250
    %v252 = vmul.f32 %v251, %v89
    %v253 = vpack.c.bf16 %v252, %v252
    %v254 = vld [vmem:[%s7] sm:$0x3]
    %vm255 = vcmask 64512
    %v257 = vsel %vm255, %v98, 0
    %vm259 = vcmask 1043456
    %v261 = vsel %vm259, %v253, 0
    %263 = vmatprep.subr.bf16.mxu0 0
    %264 = vmatpush1.bf16.msra.mxu0 %v261
    %265 = vmatprep.subr.bf16.mxu0 0
    %266 = vmatpush1.bf16.msra.mxu0 0
    %267 = vmatprep.subr.bf16.mxu0 0
    %268 = vmatpush1.bf16.msra.mxu0 0
    %269 = vmatprep.subr.bf16.mxu0 0
    %270 = vmatpush1.bf16.msra.mxu0 0
    %271 = vmatprep.subr.bf16.mxu0 0
    %272 = vmatpush1.bf16.msra.mxu0 0
    %273 = vmatprep.subr.bf16.mxu0 0
    %274 = vmatpush1.bf16.msra.mxu0 0
    %275 = vmatprep.subr.bf16.mxu0 0
    %276 = vmatpush1.bf16.msra.mxu0 0
    %277 = vmatprep.subr.bf16.mxu0 0
    %278 = vmatpush1.bf16.msra.mxu0 0
    %279 = vmatprep.subr.bf16.mxu0 0
    %280 = vmatpush1.bf16.msra.mxu0 0
    %281 = vmatprep.subr.bf16.mxu0 0
    %282 = vmatpush1.bf16.msra.mxu0 0
    %283 = vmatprep.subr.bf16.mxu0 0
    %284 = vmatpush1.bf16.msra.mxu0 0
    %285 = vmatprep.subr.bf16.mxu0 0
    %286 = vmatpush1.bf16.msra.mxu0 0
    %287 = vmatprep.subr.bf16.mxu0 0
    %288 = vmatpush1.bf16.msra.mxu0 0
    %289 = vmatprep.subr.bf16.mxu0 0
    %290 = vmatpush1.bf16.msra.mxu0 0
    %291 = vmatprep.subr.bf16.mxu0 0
    %292 = vmatpush1.bf16.msra.mxu0 0
    %293 = vmatprep.subr.bf16.mxu0 0
    %294 = vmatpush1.bf16.msra.mxu0 0
    %295 = vmatprep.mubr.bf16.mxu0 0
    %296 = vmatmul.mubr.bf16.gmra.mrb[0].mxu0 %v257
    %v297 = vpop.f32.mrb[0].mxu0
    %v298 = vadd.f32 0.0, %v297
    %v299 = vpop.f32.mrb[0].mxu0
    %v300 = vpop.f32.mrb[0].mxu0
    %v301 = vpop.f32.mrb[0].mxu0
    %302 = vdwg.mxu0
    %v303 = vadd.f32 %v254, %v298
    %vm304 = vcmask 254976
    %305 = vst.msk [vmem:[%s7] sm:$0x3] %vm304, %v303
  $region37: #{embedding2score_forward.1} parent=0 // pred_fallthru
    _
  // Predicated region
  $region38: #{embedding2score_forward.1} parent=0 // pred_check
    _
  $region39: #{embedding2score_forward.1} parent=0 // pred_check_branch
    %307 = sbr.rel (0) target = $region41
  $region40: #{embedding2score_forward.1} parent=0 // pred_region
    _
  $region41: #{embedding2score_forward.1} parent=0 // pred_fallthru
    _
  // Predicated region
  $region42: #{embedding2score_forward.1} parent=0 // pred_check
    _
  $region43: #{embedding2score_forward.1} parent=0 // pred_check_branch
    %309 = sbr.rel (0) target = $region45
  $region44: #{embedding2score_forward.1} parent=0 // pred_region
    _
  $region45: #{embedding2score_forward.1} parent=0 // pred_fallthru
    _

</llo_original>
